<compile_context>
chip_gen: v6e
topology: v6e:2x2x1
jax: 0.10.0
libtpu: 0.0.40
codegen_flags: <defaults>
</compile_context>

<pallas_src>
import jax
import jax.numpy as jnp
from jax.experimental import pallas as pl
from jax.experimental.pallas import tpu as pltpu

LN_EPS = 1e-5                      # config.layer_norm_eps
_INV_SQRT2 = 0.7071067811865476


# ---------------------------------------------------------------------------
# Fused kernel: dense + GELU + LayerNorm (once per row block) + decoder tile
# ---------------------------------------------------------------------------
def _lm_head_kernel(x_ref, wd_ref, bd_ref, gamma_ref, beta_ref,
                    wdec_ref, bdec_ref, o_ref, h_ref):
    # h_ref: VMEM scratch (tm, H) bf16 holding LayerNorm(gelu(dense(x)))
    # for the current row block; computed only on the first vocab tile and
    # reused for all subsequent vocab tiles of the same row block.
    @pl.when(pl.program_id(1) == 0)
    def _():
        x = x_ref[...].astype(jnp.bfloat16)                      # in-kernel cast
        h = jnp.dot(x, wd_ref[...], preferred_element_type=jnp.float32)
        h = h + bd_ref[...]                                      # f32 bias
        # exact GELU: 0.5 * x * (1 + erf(x / sqrt(2)))   (f32 math)
        g = 0.5 * h * (1.0 + jax.lax.erf(h * jnp.float32(_INV_SQRT2)))
        mean = jnp.mean(g, axis=-1, keepdims=True)
        var = jnp.mean(jnp.square(g - mean), axis=-1, keepdims=True)  # biased
        ln = (g - mean) * jax.lax.rsqrt(var + jnp.float32(LN_EPS))
        ln = ln * gamma_ref[...] + beta_ref[...]
        h_ref[...] = ln.astype(h_ref.dtype)

    # decoder tile: (tm, H) @ (H, tv) on the MXU, f32 accumulate, f32 bias.
    acc = jnp.dot(h_ref[...], wdec_ref[...], preferred_element_type=jnp.float32)
    o_ref[...] = (acc + bdec_ref[...]).astype(o_ref.dtype)


# ---------------------------------------------------------------------------
# One-time parameter preparation (keeps casts/reshapes out of the call path)
# ---------------------------------------------------------------------------
def prepare_params(params):
    """Convert raw f32 params into kernel-ready layouts/dtypes ONCE.

    Doing the bf16 weight casts here (at load time) removes ~3*H*V bytes of
    pure copy traffic that the previous version paid on every call.
    """
    H = params["dense_w"].shape[0]
    V = params["decoder_w"].shape[1]
    return {
        "dense_w": params["dense_w"].astype(jnp.bfloat16),            # [H, H]
        "dense_b": params["dense_b"].reshape(1, H).astype(jnp.float32),
        "ln_gamma": params["ln_gamma"].reshape(1, H).astype(jnp.float32),
        "ln_beta": params["ln_beta"].reshape(1, H).astype(jnp.float32),
        "decoder_w": params["decoder_w"].astype(jnp.bfloat16),        # [H, V]
        "decoder_b": params["decoder_b"].reshape(1, V).astype(jnp.float32),
    }


def _tile_config():
    """Generation-aware defaults: (tm, tv, vmem_limit_bytes)."""
    try:
        vmem_bytes = pltpu.get_tpu_info().vmem_capacity_bytes
    except Exception:
        vmem_bytes = 64 * 1024 * 1024          # conservative (v7x-sized) fallback
    if vmem_bytes >= 100 * 1024 * 1024:        # v5e / v6e: 128 MiB VMEM
        return 2048, 2048, 96 * 1024 * 1024
    return 1024, 2048, 56 * 1024 * 1024        # v7x: 64 MiB VMEM per TensorCore


# ---------------------------------------------------------------------------
# Wrapper
# ---------------------------------------------------------------------------
def mpnet_lm_head(features, prepared, *, tm=None, tv=None,
                  out_dtype=jnp.bfloat16, vmem_limit_bytes=None):
    """features: [B, S, H] float32, prepared: prepare_params(...) output.

    Returns logits [B, S, V] in out_dtype (bf16 by default to halve the
    HBM writeback of the dominant M*V logits tensor).
    """
    B, S, H = features.shape
    V = prepared["decoder_w"].shape[1]
    M = B * S

    dtm, dtv, dvmem = _tile_config()
    tm = dtm if tm is None else tm
    tv = dtv if tv is None else tv
    vmem_limit_bytes = dvmem if vmem_limit_bytes is None else vmem_limit_bytes

    # Clamp tiles to the problem. When the clamp fires the block equals the
    # full array dim (always a legal block shape); otherwise tm/tv remain
    # multiples of (16, 128) and ragged edges are handled by Pallas's masked
    # edge blocks — so there is no wrapper-side padding and no output slice.
    tm = min(tm, M)
    tv = min(tv, V)

    x2d = features.reshape(M, H)       # no cast / pad in the per-call path

    grid = (pl.cdiv(M, tm), pl.cdiv(V, tv))

    # Constant-index operands: fetched once, single-buffered (saves VMEM).
    const = {"pipeline_mode": pl.Buffered(1)} if hasattr(pl, "Buffered") else {}

    logits = pl.pallas_call(
        _lm_head_kernel,
        out_shape=jax.ShapeDtypeStruct((M, V), out_dtype),
        grid_spec=pltpu.PrefetchScalarGridSpec(
            num_scalar_prefetch=0,
            grid=grid,
            in_specs=[
                pl.BlockSpec((tm, H), lambda i, j: (i, 0)),            # x rows (f32)
                pl.BlockSpec((H, H), lambda i, j: (0, 0), **const),    # dense weight
                pl.BlockSpec((1, H), lambda i, j: (0, 0), **const),    # dense bias
                pl.BlockSpec((1, H), lambda i, j: (0, 0), **const),    # ln gamma
                pl.BlockSpec((1, H), lambda i, j: (0, 0), **const),    # ln beta
                pl.BlockSpec((H, tv), lambda i, j: (0, j)),            # decoder weight tile
                pl.BlockSpec((1, tv), lambda i, j: (0, j)),            # decoder bias tile
            ],
            out_specs=pl.BlockSpec((tm, tv), lambda i, j: (i, j)),
            scratch_shapes=[pltpu.VMEM((tm, H), jnp.bfloat16)],
        ),
        compiler_params=pltpu.CompilerParams(
            # rows: independent -> megacore-shardable on v7x (ensure an even
            # number of row blocks for best 2-TC balance on big inputs);
            # vocab: sequential so j==0 fills the hidden scratch first.
            dimension_semantics=("parallel", "arbitrary"),
            vmem_limit_bytes=vmem_limit_bytes,
        ),
    )(x2d, prepared["dense_w"], prepared["dense_b"], prepared["ln_gamma"],
      prepared["ln_beta"], prepared["decoder_w"], prepared["decoder_b"])

    return logits.reshape(B, S, V)


# ---------------------------------------------------------------------------
# Init / reference / test
# ---------------------------------------------------------------------------
def init_params(key, hidden_size, vocab_size):
    k1, k2, k3, k4, k5, k6 = jax.random.split(key, 6)
    std = 0.02
    return {
        # weights stored as [in, out] (transpose of torch nn.Linear.weight)
        "dense_w": jax.random.normal(k1, (hidden_size, hidden_size), jnp.float32) * std,
        "dense_b": jax.random.normal(k2, (hidden_size,), jnp.float32) * std,
        "ln_gamma": 1.0 + 0.1 * jax.random.normal(k3, (hidden_size,), jnp.float32),
        "ln_beta": 0.1 * jax.random.normal(k4, (hidden_size,), jnp.float32),
        "decoder_w": jax.random.normal(k5, (hidden_size, vocab_size), jnp.float32) * std,
        # torch inits self.bias to zeros; random here to exercise the add path
        "decoder_b": jax.random.normal(k6, (vocab_size,), jnp.float32) * std,
    }


def _reference(features, params):
    # plain-JAX f32 reference
    x = features @ params["dense_w"] + params["dense_b"]
    x = 0.5 * x * (1.0 + jax.lax.erf(x / jnp.sqrt(2.0)))
    mean = x.mean(-1, keepdims=True)
    var = ((x - mean) ** 2).mean(-1, keepdims=True)
    x = (x - mean) / jnp.sqrt(var + LN_EPS)
    x = x * params["ln_gamma"] + params["ln_beta"]
    return x @ params["decoder_w"] + params["decoder_b"]


if __name__ == "__main__":
    B, S, H, V = 2, 12, 32, 200        # M=24, V=200: exercises ragged tiling
    key = jax.random.PRNGKey(0)
    kf, kp = jax.random.split(key)
    features = jax.random.normal(kf, (B, S, H), jnp.float32)
    params = init_params(kp, H, V)
    prepared = prepare_params(params)

    ref = _reference(features, params)

    # 1) default config (tiles clamped to the tiny problem), bf16 logits.
    out_bf16 = jax.block_until_ready(mpnet_lm_head(features, prepared))
    assert out_bf16.shape == (B, S, V) and out_bf16.dtype == jnp.bfloat16
    assert jnp.allclose(out_bf16.astype(jnp.float32), ref, atol=3e-2, rtol=3e-2), \
        "mismatch (default tiles, bf16 logits)"

    # 2) explicit small tiles: multiple row blocks + multiple vocab blocks
    #    with ragged edges on BOTH axes (M=24 vs tm=16, V=200 vs tv=128),
    #    f32 logits -> exercises scratch reuse (j > 0) and masked-edge paths.
    out_f32 = jax.block_until_ready(
        mpnet_lm_head(features, prepared, tm=16, tv=128, out_dtype=jnp.float32))
    assert out_f32.shape == (B, S, V) and out_f32.dtype == jnp.float32
    assert jnp.allclose(out_f32, ref, atol=2e-2, rtol=2e-2), "mismatch (tiled, f32 logits)"

    print("KERNEL_OK")
</pallas_src>

<mosaic_0001>
module attributes {stable_mosaic.version = 11 : i64} {
  func.func @_lm_head_kernel(%arg0: i32, %arg1: i32, %arg2: memref<24x32xf32, #tpu.memory_space<vmem>>, %arg3: memref<32x32xbf16, #tpu.memory_space<vmem>>, %arg4: memref<1x32xf32, #tpu.memory_space<vmem>>, %arg5: memref<1x32xf32, #tpu.memory_space<vmem>>, %arg6: memref<1x32xf32, #tpu.memory_space<vmem>>, %arg7: memref<32x200xbf16, #tpu.memory_space<vmem>>, %arg8: memref<1x200xf32, #tpu.memory_space<vmem>>, %arg9: memref<24x200xbf16, #tpu.memory_space<vmem>>, %arg10: memref<24x32xbf16, #tpu.memory_space<vmem>>) attributes {dimension_semantics = [#tpu.dimension_semantics<parallel>, #tpu.dimension_semantics<arbitrary>], iteration_bounds = array<i64: 1, 1>, scalar_prefetch = 0 : i64, scratch_operands = 1 : i64, tpu.core_type = #tpu.core_type<tc>, window_params = [{transform_indices = @transform_0, window_bounds = array<i64: 24, 32>}, {pipeline_mode = #tpu.pipeline_mode<synchronous>, transform_indices = @transform_1, window_bounds = array<i64: 32, 32>}, {pipeline_mode = #tpu.pipeline_mode<synchronous>, transform_indices = @transform_2, window_bounds = array<i64: 1, 32>}, {pipeline_mode = #tpu.pipeline_mode<synchronous>, transform_indices = @transform_3, window_bounds = array<i64: 1, 32>}, {pipeline_mode = #tpu.pipeline_mode<synchronous>, transform_indices = @transform_4, window_bounds = array<i64: 1, 32>}, {transform_indices = @transform_5, window_bounds = array<i64: 32, 200>}, {transform_indices = @transform_6, window_bounds = array<i64: 1, 200>}, {transform_indices = @transform_7, window_bounds = array<i64: 24, 200>}]} {
    %c0_i32 = arith.constant 0 : i32
    %0 = arith.cmpi eq, %arg1, %c0_i32 : i32
    %1 = arith.extui %0 : i1 to i32
    %c0_i32_0 = arith.constant 0 : i32
    %2 = arith.cmpi ne, %1, %c0_i32_0 : i32
    scf.if %2 {
      %c0_8 = arith.constant 0 : index
      %c0_9 = arith.constant 0 : index
      %11 = vector.load %arg2[%c0_8, %c0_9] : memref<24x32xf32, #tpu.memory_space<vmem>>, vector<24x32xf32>
      %12 = arith.truncf %11 : vector<24x32xf32> to vector<24x32xbf16>
      %c0_10 = arith.constant 0 : index
      %c0_11 = arith.constant 0 : index
      %13 = vector.load %arg3[%c0_10, %c0_11] : memref<32x32xbf16, #tpu.memory_space<vmem>>, vector<32x32xbf16>
      %cst_12 = arith.constant dense<0.000000e+00> : vector<24x32xf32>
      %14 = tpu.matmul %12, %13, %cst_12 {dimension_numbers = #tpu.dot_dimension_numbers<[1], [0], [0], [1], [0, 0, 1, 1], [], []>} : vector<24x32xbf16>, vector<32x32xbf16>, vector<24x32xf32> -> vector<24x32xf32>
      %c0_13 = arith.constant 0 : index
      %c0_14 = arith.constant 0 : index
      %15 = vector.load %arg4[%c0_13, %c0_14] : memref<1x32xf32, #tpu.memory_space<vmem>>, vector<1x32xf32>
      %16 = vector.broadcast %15 : vector<1x32xf32> to vector<24x32xf32>
      %17 = arith.addf %14, %16 : vector<24x32xf32>
      %cst_15 = arith.constant 5.000000e-01 : f32
      %18 = vector.broadcast %cst_15 : f32 to vector<24x32xf32>
      %19 = arith.mulf %18, %17 : vector<24x32xf32>
      %cst_16 = arith.constant 0.707106769 : f32
      %20 = vector.broadcast %cst_16 : f32 to vector<24x32xf32>
      %21 = arith.mulf %17, %20 : vector<24x32xf32>
      %22 = math.erf %21 : vector<24x32xf32>
      %cst_17 = arith.constant 1.000000e+00 : f32
      %23 = vector.broadcast %cst_17 : f32 to vector<24x32xf32>
      %24 = arith.addf %23, %22 : vector<24x32xf32>
      %25 = arith.mulf %19, %24 : vector<24x32xf32>
      %cst_18 = arith.constant dense<0.000000e+00> : vector<24xf32>
      %26 = vector.multi_reduction <add>, %25, %cst_18 [1] : vector<24x32xf32> to vector<24xf32>
      %27 = vector.shape_cast %26 : vector<24xf32> to vector<24x1xf32>
      %cst_19 = arith.constant 3.200000e+01 : f32
      %28 = vector.broadcast %cst_19 : f32 to vector<24x1xf32>
      %29 = arith.divf %27, %28 : vector<24x1xf32>
      %30 = vector.broadcast %29 : vector<24x1xf32> to vector<24x32xf32>
      %31 = arith.subf %25, %30 : vector<24x32xf32>
      %32 = arith.mulf %31, %31 : vector<24x32xf32>
      %cst_20 = arith.constant dense<0.000000e+00> : vector<24xf32>
      %33 = vector.multi_reduction <add>, %32, %cst_20 [1] : vector<24x32xf32> to vector<24xf32>
      %34 = vector.shape_cast %33 : vector<24xf32> to vector<24x1xf32>
      %cst_21 = arith.constant 3.200000e+01 : f32
      %35 = vector.broadcast %cst_21 : f32 to vector<24x1xf32>
      %36 = arith.divf %34, %35 : vector<24x1xf32>
      %37 = vector.broadcast %29 : vector<24x1xf32> to vector<24x32xf32>
      %38 = arith.subf %25, %37 : vector<24x32xf32>
      %cst_22 = arith.constant 9.99999974E-6 : f32
      %39 = vector.broadcast %cst_22 : f32 to vector<24x1xf32>
      %40 = arith.addf %36, %39 : vector<24x1xf32>
      %41 = math.rsqrt %40 : vector<24x1xf32>
      %42 = vector.broadcast %41 : vector<24x1xf32> to vector<24x32xf32>
      %43 = arith.mulf %38, %42 : vector<24x32xf32>
      %c0_23 = arith.constant 0 : index
      %c0_24 = arith.constant 0 : index
      %44 = vector.load %arg5[%c0_23, %c0_24] : memref<1x32xf32, #tpu.memory_space<vmem>>, vector<1x32xf32>
      %45 = vector.broadcast %44 : vector<1x32xf32> to vector<24x32xf32>
      %46 = arith.mulf %43, %45 : vector<24x32xf32>
      %c0_25 = arith.constant 0 : index
      %c0_26 = arith.constant 0 : index
      %47 = vector.load %arg6[%c0_25, %c0_26] : memref<1x32xf32, #tpu.memory_space<vmem>>, vector<1x32xf32>
      %48 = vector.broadcast %47 : vector<1x32xf32> to vector<24x32xf32>
      %49 = arith.addf %46, %48 : vector<24x32xf32>
      %50 = arith.truncf %49 : vector<24x32xf32> to vector<24x32xbf16>
      %c0_27 = arith.constant 0 : index
      %c0_28 = arith.constant 0 : index
      %51 = vector.load %arg10[%c0_27, %c0_28] : memref<24x32xbf16, #tpu.memory_space<vmem>>, vector<24x32xbf16>
      tpu.vector_store %arg10[%c0_27, %c0_28], %50 {strides = array<i32>} : memref<24x32xbf16, #tpu.memory_space<vmem>>, vector<24x32xbf16>,
    } else {
    }
    %c0 = arith.constant 0 : index
    %c0_1 = arith.constant 0 : index
    %3 = vector.load %arg10[%c0, %c0_1] : memref<24x32xbf16, #tpu.memory_space<vmem>>, vector<24x32xbf16>
    %c0_2 = arith.constant 0 : index
    %c0_3 = arith.constant 0 : index
    %4 = vector.load %arg7[%c0_2, %c0_3] : memref<32x200xbf16, #tpu.memory_space<vmem>>, vector<32x200xbf16>
    %cst = arith.constant dense<0.000000e+00> : vector<24x200xf32>
    %5 = tpu.matmul %3, %4, %cst {dimension_numbers = #tpu.dot_dimension_numbers<[1], [0], [0], [1], [0, 0, 1, 1], [], []>} : vector<24x32xbf16>, vector<32x200xbf16>, vector<24x200xf32> -> vector<24x200xf32>
    %c0_4 = arith.constant 0 : index
    %c0_5 = arith.constant 0 : index
    %6 = vector.load %arg8[%c0_4, %c0_5] : memref<1x200xf32, #tpu.memory_space<vmem>>, vector<1x200xf32>
    %7 = vector.broadcast %6 : vector<1x200xf32> to vector<24x200xf32>
    %8 = arith.addf %5, %7 : vector<24x200xf32>
    %9 = arith.truncf %8 : vector<24x200xf32> to vector<24x200xbf16>
    %c0_6 = arith.constant 0 : index
    %c0_7 = arith.constant 0 : index
    %10 = vector.load %arg9[%c0_6, %c0_7] : memref<24x200xbf16, #tpu.memory_space<vmem>>, vector<24x200xbf16>
    tpu.vector_store %arg9[%c0_6, %c0_7], %9 {strides = array<i32>} : memref<24x200xbf16, #tpu.memory_space<vmem>>, vector<24x200xbf16>,
    return
  }
  func.func @transform_0(%arg0: i32, %arg1: i32) -> (i32, i32) {
    %c0_i32 = arith.constant 0 : i32
    %c0_i32_0 = arith.constant 0 : i32
    return %arg0, %c0_i32 : i32, i32
  }
  func.func @transform_1(%arg0: i32, %arg1: i32) -> (i32, i32) {
    %c0_i32 = arith.constant 0 : i32
    %c0_i32_0 = arith.constant 0 : i32
    %c0_i32_1 = arith.constant 0 : i32
    return %c0_i32, %c0_i32_0 : i32, i32
  }
  func.func @transform_2(%arg0: i32, %arg1: i32) -> (i32, i32) {
    %c0_i32 = arith.constant 0 : i32
    %c0_i32_0 = arith.constant 0 : i32
    %c0_i32_1 = arith.constant 0 : i32
    return %c0_i32, %c0_i32_0 : i32, i32
  }
  func.func @transform_3(%arg0: i32, %arg1: i32) -> (i32, i32) {
    %c0_i32 = arith.constant 0 : i32
    %c0_i32_0 = arith.constant 0 : i32
    %c0_i32_1 = arith.constant 0 : i32
    return %c0_i32, %c0_i32_0 : i32, i32
  }
  func.func @transform_4(%arg0: i32, %arg1: i32) -> (i32, i32) {
    %c0_i32 = arith.constant 0 : i32
    %c0_i32_0 = arith.constant 0 : i32
    %c0_i32_1 = arith.constant 0 : i32
    return %c0_i32, %c0_i32_0 : i32, i32
  }
  func.func @transform_5(%arg0: i32, %arg1: i32) -> (i32, i32) {
    %c0_i32 = arith.constant 0 : i32
    %c0_i32_0 = arith.constant 0 : i32
    return %c0_i32, %arg1 : i32, i32
  }
  func.func @transform_6(%arg0: i32, %arg1: i32) -> (i32, i32) {
    %c0_i32 = arith.constant 0 : i32
    %c0_i32_0 = arith.constant 0 : i32
    return %c0_i32, %arg1 : i32, i32
  }
  func.func @transform_7(%arg0: i32, %arg1: i32) -> (i32, i32) {
    %c0_i32 = arith.constant 0 : i32
    return %arg0, %arg1 : i32, i32
  }
}

</mosaic_0001>

<llo_original>
// kernel: tpu_custom_call.1
$region0: #{tpu_custom_call.1}
  #allocation0 [shape = 'u32[]', space=smem, size = 0x4, offset = 0x4, fixed_abs, tag = 'smem constant byte address 0x4 - core index']
  #allocation1 [shape = 'u32[144,128]{1,0:T(1,128)}', space=vmem, size = 0x12000, scoped, tag = 'internal scratch']
  #allocation2 [shape = 'bf16[24,32]{1,0:T(8,128)(2,1)}', space=vmem, size = 0x1800, scoped, tag = 'scratch operand']
  %s0 = inlined_call_operand.hbm [shape: f32[24,32], index: 0, kind: input, shape index: {}]
  %s1 = inlined_call_operand.hbm [shape: bf16[32,32], index: 1, kind: input, shape index: {}]
  %s2 = inlined_call_operand.vmem [shape: f32[1,32], index: 2, kind: input, shape index: {}]
  %s3 = inlined_call_operand.vmem [shape: f32[1,32], index: 3, kind: input, shape index: {}]
  %s4 = inlined_call_operand.vmem [shape: f32[1,32], index: 4, kind: input, shape index: {}]
  %s5 = inlined_call_operand.hbm [shape: bf16[32,200], index: 5, kind: input, shape index: {}]
  %s6 = inlined_call_operand.vmem [shape: f32[1,200], index: 6, kind: input, shape index: {}]
  %s7 = inlined_call_operand.hbm [shape: bf16[24,200], index: 7, kind: output, shape index: {}]
  %s8 = sld [smem:[#allocation0]]
  $region54: #{tpu_custom_call.1} parent=0
    _
  %s10 = ssub.s32 1, %s8
  %s11 = scalar_select 0, %s10, %s8
  $region1: #{tpu_custom_call.1} parent=0
    #allocation3 [shape = 'u8[12288]{0}', space=vmem, size = 0x3000, scoped, tag = 'input window, operand 0, single buffered']
    #allocation4 [shape = 's32[1]{0}', space=sflag, size = 0x4, scoped, tag = 'scoped memory for tpu_custom_call.1']
    #allocation5 [shape = 's32[1]{0}', space=sflag, size = 0x4, scoped, tag = 'scoped memory for tpu_custom_call.1']
    #allocation6 [shape = 'u8[8192]{0}', space=vmem, size = 0x2000, scoped, tag = 'input window, operand 1, single buffered']
    #allocation7 [shape = 's32[1]{0}', space=sflag, size = 0x4, scoped, tag = 'scoped memory for tpu_custom_call.1']
    #allocation8 [shape = 'u8[16384]{0}', space=vmem, size = 0x4000, scoped, tag = 'input window, operand 5, single buffered']
    #allocation9 [shape = 'u8[12288]{0}', space=vmem, size = 0x3000, scoped, tag = 'output window, operand 0, single buffered']
    %12 = vsyncpa [#allocation4], 0
    %13 = vsyncpa [#allocation7], 0
    %14 = vsyncpa [#allocation5], 0
    // Predicated region
    $region2: #{tpu_custom_call.1} parent=1 // pred_check
      _
    $region3: #{tpu_custom_call.1} parent=1 // pred_check_branch
      %16 = sbr.rel (0) target = $region5
    $region4: #{tpu_custom_call.1} parent=1 // pred_region
      %s18 = ssub.s32 384, 384
      %19 = vsyncadd [#allocation4], %s18
      %s20 = sshll.u32 [#allocation3], 4
      %s21 = int_to_ptr.vmem [resolvable:$true] %s20
      %26 = dma.hbm_to_vmem [thread:$0]  %s0, 384, %s21, [#allocation4], 128, 128, 8
    $region5: #{tpu_custom_call.1} parent=1 // pred_fallthru
      _
    // Predicated region
    $region6: #{tpu_custom_call.1} parent=1 // pred_check
      _
    $region7: #{tpu_custom_call.1} parent=1 // pred_check_branch
      %28 = sbr.rel (0) target = $region9
    $region8: #{tpu_custom_call.1} parent=1 // pred_region
      %s30 = ssub.s32 256, 256
      %31 = vsyncadd [#allocation7], %s30
      %s32 = sshll.u32 [#allocation6], 4
      %s33 = int_to_ptr.vmem [resolvable:$true] %s32
      %38 = dma.hbm_to_vmem [thread:$0]  %s1, 256, %s33, [#allocation7], 64, 64, 4
    $region9: #{tpu_custom_call.1} parent=1 // pred_fallthru
      _
    // Predicated region
    $region10: #{tpu_custom_call.1} parent=1 // pred_check
      _
    $region11: #{tpu_custom_call.1} parent=1 // pred_check_branch
      %40 = sbr.rel (0) target = $region13
    $region12: #{tpu_custom_call.1} parent=1 // pred_region
      _
    $region13: #{tpu_custom_call.1} parent=1 // pred_fallthru
      _
    // Predicated region
    $region14: #{tpu_custom_call.1} parent=1 // pred_check
      _
    $region15: #{tpu_custom_call.1} parent=1 // pred_check_branch
      %42 = sbr.rel (0) target = $region17
    $region16: #{tpu_custom_call.1} parent=1 // pred_region
      _
    $region17: #{tpu_custom_call.1} parent=1 // pred_fallthru
      _
    // Predicated region
    $region18: #{tpu_custom_call.1} parent=1 // pred_check
      _
    $region19: #{tpu_custom_call.1} parent=1 // pred_check_branch
      %44 = sbr.rel (0) target = $region21
    $region20: #{tpu_custom_call.1} parent=1 // pred_region
      _
    $region21: #{tpu_custom_call.1} parent=1 // pred_fallthru
      _
    // Predicated region
    $region22: #{tpu_custom_call.1} parent=1 // pred_check
      _
    $region23: #{tpu_custom_call.1} parent=1 // pred_check_branch
      %46 = sbr.rel (0) target = $region25
    $region24: #{tpu_custom_call.1} parent=1 // pred_region
      %s48 = ssub.s32 512, 512
      %49 = vsyncadd [#allocation7], %s48
      %s50 = sshll.u32 [#allocation8], 4
      %s51 = int_to_ptr.vmem [resolvable:$true] %s50
      %56 = dma.hbm_to_vmem [thread:$0]  %s5, 512, %s51, [#allocation7], 128, 128, 8
    $region25: #{tpu_custom_call.1} parent=1 // pred_fallthru
      _
    // Predicated region
    $region26: #{tpu_custom_call.1} parent=1 // pred_check
      _
    $region27: #{tpu_custom_call.1} parent=1 // pred_check_branch
      %58 = sbr.rel (0) target = $region29
    $region28: #{tpu_custom_call.1} parent=1 // pred_region
      _
    $region29: #{tpu_custom_call.1} parent=1 // pred_fallthru
      _
    // Predicated region
    $region30: #{tpu_custom_call.1} parent=1 // pred_check
      _
    $region31: #{tpu_custom_call.1} parent=1 // pred_check_branch
      %60 = sbr.rel (0) target = $region33
    $region32: #{tpu_custom_call.1} parent=1 // pred_region
      %61 = dma.done [#allocation4], 384
    $region33: #{tpu_custom_call.1} parent=1 // pred_fallthru
      _
    // Predicated region
    $region34: #{tpu_custom_call.1} parent=1 // pred_check
      _
    $region35: #{tpu_custom_call.1} parent=1 // pred_check_branch
      %63 = sbr.rel (0) target = $region37
    $region36: #{tpu_custom_call.1} parent=1 // pred_region
      %64 = dma.done [#allocation7], 256
    $region37: #{tpu_custom_call.1} parent=1 // pred_fallthru
      _
    // Predicated region
    $region38: #{tpu_custom_call.1} parent=1 // pred_check
      _
    $region39: #{tpu_custom_call.1} parent=1 // pred_check_branch
      %66 = sbr.rel (0) target = $region41
    $region40: #{tpu_custom_call.1} parent=1 // pred_region
      %67 = dma.done [#allocation7], 512
    $region41: #{tpu_custom_call.1} parent=1 // pred_fallthru
      _
    %p69 = scmp.eq.s32.totalorder 0, 0
    // Predicated region
    $region42: #{tpu_custom_call.1} parent=1 // pred_check
      %p70 = pneg %p69
    $region43: #{tpu_custom_call.1} parent=1 // pred_check_branch
      %72 = sbr.rel (%p70) target = $region45
    $region44: #{tpu_custom_call.1} parent=1 // pred_region
      %v73 = vld [vmem:[#allocation3] sm:$0xff]
      %v74 = vld [vmem:[#allocation3 + $0x8] sm:$0xff]
      %v75 = vld [vmem:[#allocation3 + $0x10] sm:$0xff]
      %v76 = vpack.c.bf16 %v74, %v73
      %v77 = vpack.c.bf16 %v75, %v75
      %v78 = vld [vmem:[#allocation6] sm:$0xf]
      %v79 = vld [vmem:[#allocation6 + $0x4] sm:$0xf]
      %v80 = vld [vmem:[#allocation6 + $0x8] sm:$0xf]
      %v81 = vld [vmem:[#allocation6 + $0xc] sm:$0xf]
      %v82 = vld [vmem:[%s2] sm:$0x1]
      %v84 = vlaneseq
      %v85 = vshrl.u32 %v84, 7
      %v86 = vsub.s32 0, %v85
      %v87 = vrot.slane %v82, %v86
      %v93 = vunpack.c.l.b16 %v78
      %v94 = vunpack.c.l.b16 %v79
      %v95 = vunpack.c.l.b16 %v80
      %v96 = vunpack.c.l.b16 %v81
      %v97 = vpack.c.b16 %v94, %v93
      %v98 = vpack.c.b16 %v96, %v95
      %vm101 = vcmask 261120
      %v103 = vsel %vm101, %v76, 0
      %v106 = vsel %vm101, %v77, 0
      %108 = vmatprep.subr.bf16.mxu0 0
      %109 = vmatpush1.bf16.msra.mxu0 0
      %110 = vmatprep.subr.bf16.mxu0 0
      %111 = vmatpush1.bf16.msra.mxu0 0
      %112 = vmatprep.subr.bf16.mxu0 0
      %113 = vmatpush1.bf16.msra.mxu0 0
      %114 = vmatprep.subr.bf16.mxu0 0
      %115 = vmatpush1.bf16.msra.mxu0 0
      %116 = vmatprep.subr.bf16.mxu0 0
      %117 = vmatpush1.bf16.msra.mxu0 0
      %118 = vmatprep.subr.bf16.mxu0 0
      %119 = vmatpush1.bf16.msra.mxu0 0
      %120 = vmatprep.subr.bf16.mxu0 0
      %121 = vmatpush1.bf16.msra.mxu0 %v98
      %122 = vmatprep.subr.bf16.mxu0 0
      %123 = vmatpush1.bf16.msra.mxu0 %v97
      %124 = vmatprep.subr.bf16.mxu0 0
      %125 = vmatpush2.bf16.msra.mxu0 0
      %126 = vmatprep.subr.bf16.mxu0 0
      %127 = vmatpush2.bf16.msra.mxu0 0
      %128 = vmatprep.subr.bf16.mxu0 0
      %129 = vmatpush2.bf16.msra.mxu0 0
      %130 = vmatprep.subr.bf16.mxu0 0
      %131 = vmatpush2.bf16.msra.mxu0 0
      %132 = vmatprep.subr.bf16.mxu0 0
      %133 = vmatpush2.bf16.msra.mxu0 0
      %134 = vmatprep.subr.bf16.mxu0 0
      %135 = vmatpush2.bf16.msra.mxu0 0
      %136 = vmatprep.subr.bf16.mxu0 0
      %137 = vmatpush2.bf16.msra.mxu0 0
      %138 = vmatprep.subr.bf16.mxu0 0
      %139 = vmatpush2.bf16.msra.mxu0 0
      %140 = vmatprep.mubr.bf16.mxu0 0
      %141 = vmatmul.mubr.bf16.gmra.mxu0 %v103
      %v142 = vpop.f32.mrf.mxu0
      %v143 = vadd.f32 %v87, %v142
      %v144 = vpop.f32.mrf.mxu0
      %v145 = vpop.f32.mrf.mxu0
      %v146 = vadd.f32 %v87, %v145
      %v147 = vpop.f32.mrf.mxu0
      %148 = vmatprep.mubr.bf16.mxu0 0
      %149 = vmatmul.mubr.bf16.gmra.mxu0 %v106
      %v150 = vpop.f32.mrf.mxu0
      %v151 = vadd.f32 %v87, %v150
      %v152 = vpop.f32.mrf.mxu0
      %v153 = vpop.f32.mrf.mxu0
      %v154 = vpop.f32.mrf.mxu0
      %155 = vdwg.mxu0
      %v156 = vmul.f32 %v143, 0.5
      %v157 = vmul.f32 %v146, 0.5
      %v158 = vmul.f32 %v151, 0.5
      %v159 = vmul.f32 %v143, 0.70710677
      %v160 = vmul.f32 %v146, 0.70710677
      %v161 = vmul.f32 %v151, 0.70710677
      %v162 = verf.f32.pop %v159
      %v163 = verf.f32.pop %v160
      %v164 = verf.f32.pop %v161
      %v165 = vadd.f32 %v162, 1.0
      %v166 = vadd.f32 %v163, 1.0
      %v167 = vadd.f32 %v164, 1.0
      %v168 = vmul.f32 %v156, %v165
      %v169 = vmul.f32 %v157, %v166
      %v170 = vmul.f32 %v158, %v167
      %v171 = vsel %vm101, %v168, 0.0
      %172 = vadd.xlane.f32.xlu0 %v171
      %v173 = vpop.xlane.xlu0 %172
      %v174 = vsel %vm101, %v169, 0.0
      %175 = vadd.xlane.f32.xlu0 %v174
      %v176 = vpop.xlane.xlu0 %175
      %v177 = vsel %vm101, %v170, 0.0
      %178 = vadd.xlane.f32.xlu0 %v177
      %v179 = vpop.xlane.xlu0 %178
      %v180 = vrcp.pop 32.0
      %v181 = vmul.f32 %v173, %v180
      %v182 = vmul.f32 %v176, %v180
      %v183 = vmul.f32 %v179, %v180
      %v184 = vsub.f32 %v168, %v181
      %v185 = vsub.f32 %v169, %v182
      %v186 = vsub.f32 %v170, %v183
      %v187 = vmul.f32 %v184, %v184
      %v188 = vmul.f32 %v185, %v185
      %v189 = vmul.f32 %v186, %v186
      %v190 = vsel %vm101, %v187, 0.0
      %191 = vadd.xlane.f32.xlu0 %v190
      %v192 = vpop.xlane.xlu0 %191
      %v193 = vsel %vm101, %v188, 0.0
      %194 = vadd.xlane.f32.xlu0 %v193
      %v195 = vpop.xlane.xlu0 %194
      %v196 = vsel %vm101, %v189, 0.0
      %197 = vadd.xlane.f32.xlu0 %v196
      %v198 = vpop.xlane.xlu0 %197
      %v199 = vmul.f32 %v192, %v180
      %v200 = vmul.f32 %v195, %v180
      %v201 = vmul.f32 %v198, %v180
      %v202 = vadd.f32 %v199, 1e-05
      %v203 = vadd.f32 %v200, 1e-05
      %v204 = vadd.f32 %v201, 1e-05
      %v205 = vrsqrt.pop %v202
      %v206 = vrsqrt.pop %v203
      %v207 = vrsqrt.pop %v204
      %v208 = vmul.f32 %v184, %v205
      %v209 = vmul.f32 %v185, %v206
      %v210 = vmul.f32 %v186, %v207
      %v211 = vld [vmem:[%s3] sm:$0x1]
      %v213 = vlaneseq
      %v214 = vshrl.u32 %v213, 7
      %v215 = vsub.s32 0, %v214
      %v216 = vrot.slane %v211, %v215
      %v218 = vmul.f32 %v208, %v216
      %v219 = vmul.f32 %v209, %v216
      %v220 = vmul.f32 %v210, %v216
      %v221 = vld [vmem:[%s4] sm:$0x1]
      %v223 = vlaneseq
      %v224 = vshrl.u32 %v223, 7
      %v225 = vsub.s32 0, %v224
      %v226 = vrot.slane %v221, %v225
      %v228 = vadd.f32 %v218, %v226
      %v229 = vadd.f32 %v219, %v226
      %v230 = vadd.f32 %v220, %v226
      %v231 = vpack.c.bf16 %v229, %v228
      %v232 = vpack.c.bf16 %v230, %v230
      %v235 = vunpack.c.l.b16 %v231
      %v236 = vunpack.c.h.b16 %v231
      %v237 = vunpack.c.l.b16 %v232
      %v238 = vpack.c.b16 %v235, %v235
      %v239 = vpack.c.b16 %v236, %v236
      %v240 = vpack.c.b16 %v237, %v237
      %vm244 = vcmask 257024
      %245 = vst.msk [vmem:[#allocation2] sm:$0xf] %vm244, %v238
      %246 = vst.msk [vmem:[#allocation2 + $0x4] sm:$0xf] %vm244, %v239
      %247 = vst.msk [vmem:[#allocation2 + $0x8] sm:$0xf] %vm244, %v240
    $region45: #{tpu_custom_call.1} parent=1 // pred_fallthru
      _
    %v248 = vld [vmem:[#allocation2] sm:$0xf]
    %v249 = vld [vmem:[#allocation2 + $0x4] sm:$0xf]
    %v250 = vld [vmem:[#allocation2 + $0x8] sm:$0xf]
    %v251 = vld [vmem:[#allocation8] sm:$0xff]
    %v252 = vld [vmem:[#allocation8 + $0x8] sm:$0xff]
    %v253 = vld [vmem:[#allocation8 + $0x10] sm:$0xff]
    %v254 = vld [vmem:[#allocation8 + $0x18] sm:$0xff]
    %v255 = vld [vmem:[%s6] sm:$0x3]
    %v257 = vlaneseq
    %v258 = vshrl.u32 %v257, 7
    %v259 = vsub.s32 0, %v258
    %v260 = vrot.slane %v255, %v259
    %v261 = vlaneseq
    %v262 = vshrl.u32 %v261, 7
    %v263 = vsub.s32 1, %v262
    %v264 = vrot.slane %v255, %v263
    %v270 = vunpack.c.l.b16 %v248
    %v271 = vunpack.c.l.b16 %v249
    %v272 = vunpack.c.l.b16 %v250
    %v273 = vpack.c.b16 %v271, %v270
    %v274 = vpack.c.b16 %v272, %v272
    %v279 = vunpack.c.l.b16 %v251
    %v280 = vunpack.c.h.b16 %v251
    %v281 = vunpack.c.l.b16 %v252
    %v282 = vunpack.c.h.b16 %v252
    %v283 = vunpack.c.l.b16 %v253
    %v284 = vunpack.c.h.b16 %v253
    %v285 = vunpack.c.l.b16 %v254
    %v286 = vunpack.c.h.b16 %v254
    %v287 = vpack.c.b16 %v281, %v279
    %v288 = vpack.c.b16 %v282, %v280
    %v289 = vpack.c.b16 %v285, %v283
    %v290 = vpack.c.b16 %v286, %v284
    %vm295 = vcmask 261120
    %v297 = vsel %vm295, %v273, 0
    %v300 = vsel %vm295, %v274, 0
    %302 = vmatprep.subr.bf16.mxu0 0
    %303 = vmatpush1.bf16.msra.mxu0 0
    %304 = vmatprep.subr.bf16.mxu0 0
    %305 = vmatpush1.bf16.msra.mxu0 0
    %306 = vmatprep.subr.bf16.mxu0 0
    %307 = vmatpush1.bf16.msra.mxu0 0
    %308 = vmatprep.subr.bf16.mxu0 0
    %309 = vmatpush1.bf16.msra.mxu0 0
    %310 = vmatprep.subr.bf16.mxu0 0
    %311 = vmatpush1.bf16.msra.mxu0 0
    %312 = vmatprep.subr.bf16.mxu0 0
    %313 = vmatpush1.bf16.msra.mxu0 0
    %314 = vmatprep.subr.bf16.mxu0 %v290
    %315 = vmatpush1.bf16.msra.mxu0 %v289
    %316 = vmatprep.subr.bf16.mxu0 %v288
    %317 = vmatpush1.bf16.msra.mxu0 %v287
    %318 = vmatprep.subr.bf16.mxu0 0
    %319 = vmatpush2.bf16.msra.mxu0 0
    %320 = vmatprep.subr.bf16.mxu0 0
    %321 = vmatpush2.bf16.msra.mxu0 0
    %322 = vmatprep.subr.bf16.mxu0 0
    %323 = vmatpush2.bf16.msra.mxu0 0
    %324 = vmatprep.subr.bf16.mxu0 0
    %325 = vmatpush2.bf16.msra.mxu0 0
    %326 = vmatprep.subr.bf16.mxu0 0
    %327 = vmatpush2.bf16.msra.mxu0 0
    %328 = vmatprep.subr.bf16.mxu0 0
    %329 = vmatpush2.bf16.msra.mxu0 0
    %330 = vmatprep.subr.bf16.mxu0 0
    %331 = vmatpush2.bf16.msra.mxu0 0
    %332 = vmatprep.subr.bf16.mxu0 0
    %333 = vmatpush2.bf16.msra.mxu0 0
    %334 = vmatprep.mubr.bf16.mxu0 0
    %335 = vmatmul.mubr.bf16.gmra.mxu0 %v297
    %v336 = vpop.f32.mrf.mxu0
    %v337 = vadd.f32 %v260, %v336
    %v338 = vpop.f32.mrf.mxu0
    %v339 = vadd.f32 %v264, %v338
    %v340 = vpop.f32.mrf.mxu0
    %v341 = vadd.f32 %v260, %v340
    %v342 = vpop.f32.mrf.mxu0
    %v343 = vadd.f32 %v264, %v342
    %344 = vmatprep.mubr.bf16.mxu0 0
    %345 = vmatmul.mubr.bf16.gmra.mxu0 %v300
    %v346 = vpop.f32.mrf.mxu0
    %v347 = vadd.f32 %v260, %v346
    %v348 = vpop.f32.mrf.mxu0
    %v349 = vadd.f32 %v264, %v348
    %v350 = vpop.f32.mrf.mxu0
    %v351 = vpop.f32.mrf.mxu0
    %352 = vdwg.mxu0
    %v353 = vpack.c.bf16 %v341, %v337
    %v354 = vpack.c.bf16 %v343, %v339
    %v355 = vpack.c.bf16 %v347, %v347
    %v356 = vpack.c.bf16 %v349, %v349
    %v361 = vunpack.c.l.b16 %v353
    %v362 = vunpack.c.l.b16 %v354
    %v363 = vunpack.c.h.b16 %v353
    %v364 = vunpack.c.h.b16 %v354
    %v365 = vunpack.c.l.b16 %v355
    %v366 = vunpack.c.l.b16 %v356
    %v367 = vpack.c.b16 %v362, %v361
    %v368 = vpack.c.b16 %v364, %v363
    %v369 = vpack.c.b16 %v366, %v365
    %vm373 = vcmask 1043456
    %vm374 = vcmask 588804
    %vm375 = vmor %vm374, %vm373
    %376 = vst.msk [vmem:[#allocation9] sm:$0xff] %vm375, %v367
    %377 = vst.msk [vmem:[#allocation9 + $0x8] sm:$0xff] %vm375, %v368
    %378 = vst.msk [vmem:[#allocation9 + $0x10] sm:$0xff] %vm375, %v369
    // Predicated region
    $region46: #{tpu_custom_call.1} parent=1 // pred_check
      _
    $region47: #{tpu_custom_call.1} parent=1 // pred_check_branch
      %380 = sbr.rel (0) target = $region49
    $region48: #{tpu_custom_call.1} parent=1 // pred_region
      %s382 = ssub.s32 384, 384
      %383 = vsyncadd [#allocation5], %s382
      %s384 = sshll.u32 [#allocation9], 4
      %s385 = int_to_ptr.vmem [resolvable:$true] %s384
      %390 = dma.vmem_to_hbm [thread:$0]  %s385, 384, %s7, [#allocation5], 128, 128, 8
    $region49: #{tpu_custom_call.1} parent=1 // pred_fallthru
      _
    // Predicated region
    $region50: #{tpu_custom_call.1} parent=1 // pred_check
      _
    $region51: #{tpu_custom_call.1} parent=1 // pred_check_branch
      %392 = sbr.rel (0) target = $region53
    $region52: #{tpu_custom_call.1} parent=1 // pred_region
      %393 = dma.done [#allocation5], 384
    $region53: #{tpu_custom_call.1} parent=1 // pred_fallthru
      _
    %394 = vsyncpa [#allocation4], 1
    %395 = vsyncpa [#allocation7], 1
    %396 = vsyncpa [#allocation5], 1

</llo_original>
